<compile_context>
chip_gen: v7x
topology: tpu7x:2x2x1
jax: 0.10.0
libtpu: 0.0.40
codegen_flags: <defaults>
</compile_context>

<pallas_src>
import functools

import jax
import jax.numpy as jnp
from jax.experimental import pallas as pl
from jax.experimental.pallas import tpu as pltpu

_LN2 = 0.6931471805599453

# Keeps double-buffered f32 inputs at <= ~16 MiB in flight: safe within v7x's
# 64 MiB physical VMEM and the 32 MiB scoped limit we request below.
_MAX_BLOCK_ROWS = 4096


def _round_up(v, m):
    return ((v + m - 1) // m) * m


def _ranknet_partial_kernel(x_ref, t_ref, out_ref, *, tail_rows):
    """x_ref/t_ref: (2, block_rows, 128); out_ref: (1, 1, 128) partial sums.

    tail_rows: number of valid rows in the final (ragged) grid block, or 0 if
    every block is full (static -> masking code is omitted entirely).
    """
    il = x_ref[0].astype(jnp.float32)        # (block_rows, 128)
    ir = x_ref[1].astype(jnp.float32)
    tl = t_ref[0]
    tr = t_ref[1]

    # Clamping d to +/-100 reproduces torch's BCE log clamp (min(softplus,100))
    # within f32 rounding, cheaper than clamping both softplus branches.
    d = jnp.clip(il - ir, -100.0, 100.0)
    # softplus(d), numerically stable.
    sp_pos = jnp.log1p(jnp.exp(-jnp.abs(d))) + jnp.maximum(d, 0.0)

    tie = tl == tr
    t = jnp.where(tie, jnp.float32(0.5), (tl > tr).astype(jnp.float32))

    # Fused: t*softplus(-d) + (1-t)*softplus(d) - BCE(t,t)
    #      = softplus(d) - t*d - ln2*[tie]
    contrib = sp_pos - t * d - jnp.where(tie, jnp.float32(_LN2), jnp.float32(0.0))

    if tail_rows == 0:
        # Every grid block is full: no masking anywhere.
        out_ref[...] = jnp.sum(contrib, axis=0, keepdims=True)[None]
    else:
        i = pl.program_id(0)
        last = pl.num_programs(0) - 1

        @pl.when(i != last)
        def _():
            out_ref[...] = jnp.sum(contrib, axis=0, keepdims=True)[None]

        @pl.when(i == last)
        def _():
            # The final block hangs past the array; whatever the padded rows
            # contain (possibly NaN/garbage) is zeroed before the reduction.
            row = jax.lax.broadcasted_iota(jnp.int32, contrib.shape, 0)
            masked = jnp.where(row < tail_rows, contrib, 0.0)
            out_ref[...] = jnp.sum(masked, axis=0, keepdims=True)[None]


def ranknet_with_logits_loss(inputs, targets, *, block_rows=_MAX_BLOCK_ROWS):
    """JAX/Pallas equivalent of RankNetWithLogitsLoss.forward (1-D score vectors)."""
    n = inputs.shape[0]
    size = (n // 2) * 2
    half = size // 2
    half_rows = pl.cdiv(half, 128)
    padded_half = half_rows * 128

    def as_halves(x):
        if padded_half == half and size == n:
            # zero-copy metadata view of the original buffer: (2, rows, 128)
            return x.reshape(2, half_rows, 128)
        # Misaligned fallback: one fused pad+pad+concat rearrangement.
        # TODO(synk): for large misaligned inputs, a pl.ANY + make_async_copy
        # path with element offsets would avoid this wrapper-side copy.
        left, right = x[:half], x[half:size]
        pad = padded_half - half
        if pad:
            left = jnp.pad(left, (0, pad))
            right = jnp.pad(right, (0, pad))
        return jnp.concatenate([left, right]).reshape(2, half_rows, 128)

    x3 = as_halves(inputs)     # dtype preserved (upcast happens in VMEM)
    t3 = as_halves(targets)

    # Dtype-aware sublane alignment for tiled (non-full-extent) blocks:
    # f32 -> 8 rows, bf16/f16 -> 16, int8/fp8 -> 32.
    def _align_of(dt):
        return 8 * max(1, 4 // jnp.dtype(dt).itemsize)
    align = max(_align_of(x3.dtype), _align_of(t3.dtype))

    br = min(block_rows, _MAX_BLOCK_ROWS, half_rows)
    # Keep >= 2 grid blocks whenever possible so the "parallel" axis can shard
    # across both TensorCores on v7x (no effect on single-TC v5e/v6e).
    if half_rows > align:
        br = min(br, _round_up(pl.cdiv(half_rows, 2), align))
    if br < half_rows and br % align != 0:
        br = max(align, (br // align) * align)

    num_blocks = pl.cdiv(half_rows, br)
    tail_rows = half_rows - (num_blocks - 1) * br
    if tail_rows == br:
        tail_rows = 0      # evenly divided grid -> mask code statically omitted

    kernel = functools.partial(_ranknet_partial_kernel, tail_rows=tail_rows)

    bytes_accessed = (x3.size * x3.dtype.itemsize
                      + t3.size * t3.dtype.itemsize
                      + num_blocks * 128 * 4)

    partials = pl.pallas_call(
        kernel,
        out_shape=jax.ShapeDtypeStruct((num_blocks, 1, 128), jnp.float32),
        grid=(num_blocks,),
        in_specs=[
            pl.BlockSpec((2, br, 128), lambda i: (0, i, 0)),
            pl.BlockSpec((2, br, 128), lambda i: (0, i, 0)),
        ],
        out_specs=pl.BlockSpec((1, 1, 128), lambda i: (i, 0, 0)),
        compiler_params=pltpu.CompilerParams(
            dimension_semantics=("parallel",),
            # Explicit override: covers v5e's 16 MiB scoped default at large
            # blocks while staying within v7x's 64 MiB physical VMEM.
            vmem_limit_bytes=32 * 1024 * 1024,
        ),
        cost_estimate=pl.CostEstimate(
            flops=14 * half,
            transcendentals=2 * half,
            bytes_accessed=bytes_accessed,
        ),
    )(x3, t3)

    # Finish the mean over the true pair count (padding contributed exactly 0).
    return jnp.sum(partials) / jnp.float32(half)


def _reference(inputs, targets):
    """Pure-JAX reference matching the PyTorch module semantics."""
    inputs = inputs.astype(jnp.float32)
    targets = targets.astype(jnp.float32)
    n = inputs.shape[0]
    size = (n // 2) * 2
    half = size // 2
    il, ir = inputs[:half], inputs[half:size]
    tl, tr = targets[:half], targets[half:size]
    p = jax.nn.sigmoid(il - ir)
    t = jnp.where(tl == tr, 0.5, (tl > tr).astype(jnp.float32))

    def bce(pred, tgt):
        lp = jnp.maximum(jnp.log(pred), -100.0)
        l1p = jnp.maximum(jnp.log(1.0 - pred), -100.0)
        return jnp.mean(-(tgt * lp + (1.0 - tgt) * l1p))

    return bce(p, t) - bce(t, t)


if __name__ == "__main__":
    key = jax.random.PRNGKey(0)
    k1, k2, k3, k4 = jax.random.split(key, 4)

    cases = [
        # aligned (zero-copy) path: 2048 scores -> 1024 pairs -> 8 rows of 128
        (jax.random.normal(k1, (2048,), dtype=jnp.float32),
         jax.random.randint(k2, (2048,), 0, 3).astype(jnp.float32),
         {}),
        # unaligned (zero-pad fallback) path: 390 scores -> 195 pairs
        (jax.random.normal(k3, (390,), dtype=jnp.float32),
         jax.random.randint(k4, (390,), 0, 3).astype(jnp.float32),
         {}),
        # ragged final block + pl.when-gated masking: 1280 pairs, small blocks
        (jax.random.normal(k1, (2560,), dtype=jnp.float32),
         jax.random.randint(k2, (2560,), 0, 3).astype(jnp.float32),
         {"block_rows": 8}),
    ]

    for inputs, targets, kw in cases:
        loss = jax.block_until_ready(ranknet_with_logits_loss(inputs, targets, **kw))
        ref = jax.block_until_ready(_reference(inputs, targets))
        assert jnp.allclose(loss, ref, atol=1e-5, rtol=1e-5), (loss, ref, inputs.shape, kw)

    print("KERNEL_OK")
</pallas_src>

<mosaic_0001>
module attributes {stable_mosaic.version = 11 : i64} {
  func.func @_ranknet_partial_kernel(%arg0: i32, %arg1: memref<2x8x128xf32, #tpu.memory_space<vmem>>, %arg2: memref<2x8x128xf32, #tpu.memory_space<vmem>>, %arg3: memref<1x1x128xf32, #tpu.memory_space<vmem>>) attributes {dimension_semantics = [#tpu.dimension_semantics<parallel>], iteration_bounds = array<i64: 1>, scalar_prefetch = 0 : i64, scratch_operands = 0 : i64, tpu.core_type = #tpu.core_type<tc>, window_params = [{transform_indices = @transform_0, window_bounds = array<i64: 2, 8, 128>}, {transform_indices = @transform_1, window_bounds = array<i64: 2, 8, 128>}, {transform_indices = @transform_2, window_bounds = array<i64: 1, 1, 128>}]} {
    %c0 = arith.constant 0 : index
    %c0_0 = arith.constant 0 : index
    %c0_1 = arith.constant 0 : index
    %0 = vector.load %arg1[%c0, %c0_0, %c0_1] : memref<2x8x128xf32, #tpu.memory_space<vmem>>, vector<1x8x128xf32>
    %1 = vector.shape_cast %0 : vector<1x8x128xf32> to vector<8x128xf32>
    %c1 = arith.constant 1 : index
    %c0_2 = arith.constant 0 : index
    %c0_3 = arith.constant 0 : index
    %2 = vector.load %arg1[%c1, %c0_2, %c0_3] : memref<2x8x128xf32, #tpu.memory_space<vmem>>, vector<1x8x128xf32>
    %3 = vector.shape_cast %2 : vector<1x8x128xf32> to vector<8x128xf32>
    %c0_4 = arith.constant 0 : index
    %c0_5 = arith.constant 0 : index
    %c0_6 = arith.constant 0 : index
    %4 = vector.load %arg2[%c0_4, %c0_5, %c0_6] : memref<2x8x128xf32, #tpu.memory_space<vmem>>, vector<1x8x128xf32>
    %5 = vector.shape_cast %4 : vector<1x8x128xf32> to vector<8x128xf32>
    %c1_7 = arith.constant 1 : index
    %c0_8 = arith.constant 0 : index
    %c0_9 = arith.constant 0 : index
    %6 = vector.load %arg2[%c1_7, %c0_8, %c0_9] : memref<2x8x128xf32, #tpu.memory_space<vmem>>, vector<1x8x128xf32>
    %7 = vector.shape_cast %6 : vector<1x8x128xf32> to vector<8x128xf32>
    %8 = arith.subf %1, %3 : vector<8x128xf32>
    %cst = arith.constant -1.000000e+02 : f32
    %cst_10 = arith.constant 1.000000e+02 : f32
    %9 = vector.broadcast %cst : f32 to vector<8x128xf32>
    %10 = arith.maximumf %9, %8 : vector<8x128xf32>
    %11 = vector.broadcast %cst_10 : f32 to vector<8x128xf32>
    %12 = arith.minimumf %11, %10 : vector<8x128xf32>
    %13 = math.absf %12 : vector<8x128xf32>
    %cst_11 = arith.constant 0.000000e+00 : f32
    %14 = vector.broadcast %cst_11 : f32 to vector<8x128xf32>
    %15 = arith.subf %14, %13 : vector<8x128xf32>
    %16 = math.exp %15 : vector<8x128xf32>
    %17 = math.log1p %16 : vector<8x128xf32>
    %cst_12 = arith.constant 0.000000e+00 : f32
    %18 = vector.broadcast %cst_12 : f32 to vector<8x128xf32>
    %19 = arith.maximumf %12, %18 : vector<8x128xf32>
    %20 = arith.addf %17, %19 : vector<8x128xf32>
    %21 = arith.cmpf oeq, %5, %7 : vector<8x128xf32>
    %22 = arith.cmpf ogt, %5, %7 : vector<8x128xf32>
    %23 = arith.extui %22 : vector<8x128xi1> to vector<8x128xi32>
    %24 = arith.sitofp %23 : vector<8x128xi32> to vector<8x128xf32>
    %cst_13 = arith.constant 5.000000e-01 : f32
    %25 = vector.broadcast %cst_13 : f32 to vector<8x128xf32>
    %26 = arith.select %21, %25, %24 : vector<8x128xi1>, vector<8x128xf32>
    %27 = arith.mulf %26, %12 : vector<8x128xf32>
    %28 = arith.subf %20, %27 : vector<8x128xf32>
    %cst_14 = arith.constant 0.693147182 : f32
    %cst_15 = arith.constant 0.000000e+00 : f32
    %29 = vector.broadcast %cst_14 : f32 to vector<8x128xf32>
    %30 = vector.broadcast %cst_15 : f32 to vector<8x128xf32>
    %31 = arith.select %21, %29, %30 : vector<8x128xi1>, vector<8x128xf32>
    %32 = arith.subf %28, %31 : vector<8x128xf32>
    %cst_16 = arith.constant dense<0.000000e+00> : vector<128xf32>
    %33 = vector.multi_reduction <add>, %32, %cst_16 [0] : vector<8x128xf32> to vector<128xf32>
    %34 = vector.shape_cast %33 : vector<128xf32> to vector<1x128xf32>
    %35 = vector.shape_cast %34 : vector<1x128xf32> to vector<1x1x128xf32>
    %c0_17 = arith.constant 0 : index
    %c0_18 = arith.constant 0 : index
    %c0_19 = arith.constant 0 : index
    %36 = vector.load %arg3[%c0_17, %c0_18, %c0_19] : memref<1x1x128xf32, #tpu.memory_space<vmem>>, vector<1x1x128xf32>
    tpu.vector_store %arg3[%c0_17, %c0_18, %c0_19], %35 {strides = array<i32>} : memref<1x1x128xf32, #tpu.memory_space<vmem>>, vector<1x1x128xf32>,
    return
  }
  func.func @transform_0(%arg0: i32) -> (i32, i32, i32) {
    %c0_i32 = arith.constant 0 : i32
    %c0_i32_0 = arith.constant 0 : i32
    %c0_i32_1 = arith.constant 0 : i32
    return %c0_i32, %arg0, %c0_i32_0 : i32, i32, i32
  }
  func.func @transform_1(%arg0: i32) -> (i32, i32, i32) {
    %c0_i32 = arith.constant 0 : i32
    %c0_i32_0 = arith.constant 0 : i32
    %c0_i32_1 = arith.constant 0 : i32
    return %c0_i32, %arg0, %c0_i32_0 : i32, i32, i32
  }
  func.func @transform_2(%arg0: i32) -> (i32, i32, i32) {
    %c0_i32 = arith.constant 0 : i32
    %c0_i32_0 = arith.constant 0 : i32
    %c0_i32_1 = arith.constant 0 : i32
    return %arg0, %c0_i32, %c0_i32_0 : i32, i32, i32
  }
}

</mosaic_0001>

<llo_original>
// kernel: tpu_custom_call.1
$region0: #{tpu_custom_call.1}
  #allocation0 [shape = 'u32[]', space=smem, size = 0x4, offset = 0x4, fixed_abs, tag = 'smem constant byte address 0x4 - core index']
  #allocation1 [shape = 'u32[144,128]{1,0:T(1,128)}', space=vmem, size = 0x12000, scoped, tag = 'internal scratch']
  %s0 = inlined_call_operand.hbm [shape: f32[2,8,128], index: 0, kind: input, shape index: {}]
  %s1 = inlined_call_operand.hbm [shape: f32[2,8,128], index: 1, kind: input, shape index: {}]
  %s2 = inlined_call_operand.hbm [shape: f32[1,1,128], index: 2, kind: output, shape index: {}]
  %s3 = sld [smem:[#allocation0]]
  $region26: #{tpu_custom_call.1} parent=0
    _
  %s5 = ssub.s32 1, %s3
  %s6 = scalar_select 0, %s5, %s3
  $region1: #{tpu_custom_call.1} parent=0
    #allocation2 [shape = 'u8[8192]{0}', space=vmem, size = 0x2000, scoped, tag = 'input window, operand 0, single buffered']
    #allocation3 [shape = 's32[1]{0}', space=sflag, size = 0x4, scoped, tag = 'scoped memory for tpu_custom_call.1']
    #allocation4 [shape = 's32[1]{0}', space=sflag, size = 0x4, scoped, tag = 'scoped memory for tpu_custom_call.1']
    #allocation5 [shape = 'u8[8192]{0}', space=vmem, size = 0x2000, scoped, tag = 'input window, operand 1, single buffered']
    #allocation6 [shape = 's32[1]{0}', space=sflag, size = 0x4, scoped, tag = 'scoped memory for tpu_custom_call.1']
    #allocation7 [shape = 'u8[512]{0}', space=vmem, size = 0x400, scoped, tag = 'output window, operand 0, single buffered']
    %7 = vsyncpa [#allocation3], 0
    %8 = vsyncpa [#allocation6], 0
    %9 = vsyncpa [#allocation4], 0
    // Predicated region
    $region2: #{tpu_custom_call.1} parent=1 // pred_check
      _
    $region3: #{tpu_custom_call.1} parent=1 // pred_check_branch
      %11 = sbr.rel (0) target = $region5
    $region4: #{tpu_custom_call.1} parent=1 // pred_region
      %s13 = ssub.s32 256, 256
      %14 = vsyncadd [#allocation3], %s13
      %s15 = sshll.u32 [#allocation2], 4
      %s16 = int_to_ptr.vmem [resolvable:$true] %s15
      %21 = dma.hbm_to_vmem [thread:$0]  %s0, 256, %s16, [#allocation3], 128, 128, 8
    $region5: #{tpu_custom_call.1} parent=1 // pred_fallthru
      _
    // Predicated region
    $region6: #{tpu_custom_call.1} parent=1 // pred_check
      _
    $region7: #{tpu_custom_call.1} parent=1 // pred_check_branch
      %23 = sbr.rel (0) target = $region9
    $region8: #{tpu_custom_call.1} parent=1 // pred_region
      %s25 = ssub.s32 256, 256
      %26 = vsyncadd [#allocation6], %s25
      %s27 = sshll.u32 [#allocation5], 4
      %s28 = int_to_ptr.vmem [resolvable:$true] %s27
      %33 = dma.hbm_to_vmem [thread:$0]  %s1, 256, %s28, [#allocation6], 128, 128, 8
    $region9: #{tpu_custom_call.1} parent=1 // pred_fallthru
      _
    // Predicated region
    $region10: #{tpu_custom_call.1} parent=1 // pred_check
      _
    $region11: #{tpu_custom_call.1} parent=1 // pred_check_branch
      %35 = sbr.rel (0) target = $region13
    $region12: #{tpu_custom_call.1} parent=1 // pred_region
      %36 = dma.done [#allocation3], 256
    $region13: #{tpu_custom_call.1} parent=1 // pred_fallthru
      _
    // Predicated region
    $region14: #{tpu_custom_call.1} parent=1 // pred_check
      _
    $region15: #{tpu_custom_call.1} parent=1 // pred_check_branch
      %38 = sbr.rel (0) target = $region17
    $region16: #{tpu_custom_call.1} parent=1 // pred_region
      %39 = dma.done [#allocation6], 256
    $region17: #{tpu_custom_call.1} parent=1 // pred_fallthru
      _
    %v40 = vld [vmem:[#allocation2] sm:$0xff]
    %s41 = scalar_lea.vmem [#allocation2], 8
    %v42 = vld [vmem:[%s41] sm:$0xff]
    %v43 = vld [vmem:[#allocation5] sm:$0xff]
    %s44 = scalar_lea.vmem [#allocation5], 8
    %v45 = vld [vmem:[%s44] sm:$0xff]
    %v46 = vsub.f32 %v40, %v42
    %v47 = vmax.f32 %v46, -100.0
    %v48 = vmin.f32 %v47, 100.0
    %v49 = vand.u32 2147483647, %v48
    %v50 = vsub.f32 0.0, %v49
    %v51 = vmul.f32 %v50, 1.442695
    %v52 = vpow.pop %v51
    %v53 = vadd.f32 %v52, 1.0
    %v54 = vlog2.pop %v53
    %v55 = vmul.f32 %v54, 0.6931472
    %v56 = vmul.f32 -0.5, %v52
    %v57 = vadd.f32 %v56, 1.0
    %v58 = vmul.f32 %v57, %v52
    %v59 = vand.u32 2147483647, %v52
    %vm60 = vcmp.lt.f32.partialorder %v59, 0.0004427343
    %v61 = vsel %vm60, %v58, %v55
    %v62 = vmax.f32 %v48, 0.0
    %v63 = vadd.f32 %v61, %v62
    %vm64 = vcmp.eq.f32.partialorder %v43, %v45
    %vm65 = vcmp.gt.f32.partialorder %v43, %v45
    %v66 = vsel %vm65, 1, 0
    %v67 = vcvt.s32.f32 %v66
    %v68 = vsel %vm64, 0.5, %v67
    %v69 = vmul.f32 %v68, %v48
    %v70 = vsub.f32 %v63, %v69
    %v71 = vsel %vm64, 0.6931472, 0.0
    %v72 = vsub.f32 %v70, %v71
    %v73 = vrot.slane %v72, 4
    %v74 = vadd.f32 %v72, %v73
    %v75 = vrot.slane %v74, 2
    %v76 = vadd.f32 %v74, %v75
    %v77 = vrot.slane %v76, 1
    %v78 = vadd.f32 %v76, %v77
    %79 = vst [vmem:[#allocation7] sm:$0x1] %v78
    // Predicated region
    $region18: #{tpu_custom_call.1} parent=1 // pred_check
      _
    $region19: #{tpu_custom_call.1} parent=1 // pred_check_branch
      %81 = sbr.rel (0) target = $region21
    $region20: #{tpu_custom_call.1} parent=1 // pred_region
      %s83 = ssub.s32 16, 16
      %84 = vsyncadd [#allocation4], %s83
      %s86 = sshll.u32 [#allocation7], 4
      %s87 = int_to_ptr.vmem [resolvable:$true] %s86
      %89 = dma.vmem_to_hbm [thread:$0]  %s87, 16, %s2, [#allocation4]
    $region21: #{tpu_custom_call.1} parent=1 // pred_fallthru
      _
    // Predicated region
    $region22: #{tpu_custom_call.1} parent=1 // pred_check
      _
    $region23: #{tpu_custom_call.1} parent=1 // pred_check_branch
      %91 = sbr.rel (0) target = $region25
    $region24: #{tpu_custom_call.1} parent=1 // pred_region
      %92 = dma.done [#allocation4], 16
    $region25: #{tpu_custom_call.1} parent=1 // pred_fallthru
      _
    %93 = vsyncpa [#allocation3], 1
    %94 = vsyncpa [#allocation6], 1
    %95 = vsyncpa [#allocation4], 1

</llo_original>
